<compile_context>
chip_gen: v7x
topology: tpu7x:2x2x1
jax: 0.10.0
libtpu: 0.0.40
codegen_flags: <defaults>
</compile_context>

<pallas_src>
import jax
import jax.numpy as jnp
from jax.experimental import pallas as pl
from jax.experimental.pallas import tpu as pltpu


def _round_up(n, m):
    return ((n + m - 1) // m) * m


def _sap_pool_kernel(len_ref,            # (Bt, 1)  int32 valid-frame counts
                     x_ref,              # (Bt, Tc, Dp) bf16 time chunk
                     wa_ref, ba_ref,     # (Dp, Hp) bf16, (1, Hp) f32
                     vt_ref, bv_ref,     # (1, Hp) f32, (1, 1) f32
                     hid_ref,            # (Bt, Hp) f32 pooled hidden (output)
                     m_sc, l_sc, acc_sc):  # (Bt,1),(Bt,1),(Bt,Hp) f32 scratch
    t = pl.program_id(1)
    Bt, Tc, Dp = x_ref.shape
    Hp = wa_ref.shape[1]

    @pl.when(t == 0)
    def _():
        m_sc[...] = jnp.full_like(m_sc, -1e30)
        l_sc[...] = jnp.zeros_like(l_sc)
        acc_sc[...] = jnp.zeros_like(acc_sc)

    # Projection + tanh: bf16 MXU operands, f32 accumulate, f32 EUP tanh.
    x_flat = x_ref[...].reshape(Bt * Tc, Dp)          # pure relayout (Tc % 16 == 0)
    h_flat = jnp.tanh(
        jnp.dot(x_flat, wa_ref[...], preferred_element_type=jnp.float32)
        + ba_ref[...])                                # (Bt*Tc, Hp) f32
    h3 = h_flat.reshape(Bt, Tc, Hp)

    # Attention logits on VPU + lane reduce (keeps the MXU slot for the projection).
    logits = jnp.sum(h3 * vt_ref[...].reshape(1, 1, Hp), axis=-1) + bv_ref[...]  # (Bt, Tc)

    # Length mask over the global time index.
    t_idx = t * Tc + jax.lax.broadcasted_iota(jnp.int32, (Bt, Tc), 1)
    masked = jnp.where(t_idx < len_ref[...], logits, jnp.float32(-1e30))

    # Online masked softmax, unnormalized accumulation.
    m_prev = m_sc[...]
    m_new = jnp.maximum(m_prev, jnp.max(masked, axis=-1, keepdims=True))   # (Bt, 1)
    corr = jnp.exp(m_prev - m_new)
    e = jnp.exp(masked - m_new)    # masked frames underflow to 0; no extra select
    l_sc[...] = corr * l_sc[...] + jnp.sum(e, axis=-1, keepdims=True)
    acc_sc[...] = corr * acc_sc[...] + jnp.einsum(
        'bqt,bth->bqh', e[:, None, :], h3,
        preferred_element_type=jnp.float32)[:, 0, :]
    m_sc[...] = m_new

    @pl.when(t == pl.num_programs(1) - 1)
    def _():
        # Exact reciprocal (not on the critical slot). Guard fully-masked rows:
        # padded batch rows / length==0 give finite garbage (sliced off by the
        # caller) where the PyTorch reference would give NaN (0/0).
        inv = pl.reciprocal(jnp.maximum(l_sc[...], jnp.float32(1e-30)), approx=False)
        hid_ref[...] = (acc_sc[...] * inv).astype(hid_ref.dtype)


def prepare_params(params):
    """Pad / cast the SAP parameters ONCE (not per forward call)."""
    D, H = params["W_a"].shape
    O = params["W_l"].shape[1]
    Dp = _round_up(D, 128)
    Hp = _round_up(H, 128)
    f32, bf16 = jnp.float32, jnp.bfloat16
    wa = jnp.zeros((Dp, Hp), bf16).at[:D, :H].set(params["W_a"].astype(bf16))
    ba = jnp.zeros((1, Hp), f32).at[:, :H].set(params["b_a"].reshape(1, H).astype(f32))
    vt = jnp.zeros((1, Hp), f32).at[:, :H].set(params["v"].reshape(1, H).astype(f32))
    bv = params["b_v"].reshape(1, 1).astype(f32)
    return {
        "D": D, "H": H, "O": O, "Dp": Dp, "Hp": Hp,
        "W_a": wa, "b_a": ba, "v_t": vt, "b_v": bv,
        "W_l": params["W_l"].astype(f32),
        "b_l": params["b_l"].reshape(1, O).astype(f32),
    }


def model_forward(x, length, prep, *, batch_tile=8, time_chunk=512):
    """x: (B, T, D) float, length: (B,) int -> (B, out_dim) f32.

    batch_tile: raise to 16-32 on v6e/v7x for large batches (sweep); on v7x keep
    (padded B / batch_tile) >= 2 so the "parallel" axis can split across both
    TensorCores. time_chunk: largest T chunk streamed per grid step.
    """
    B, T, D = x.shape
    assert D == prep["D"], "feature dim mismatch with prepared params"
    Dp, Hp, H = prep["Dp"], prep["Hp"], prep["H"]

    Bt = _round_up(max(batch_tile, 8), 8)
    Bp = _round_up(max(B, 1), Bt)

    # T chunking: Tc multiple of 16 (free bf16 reshape), balanced across chunks.
    n_chunks = -(-T // max(time_chunk, 16))
    Tc = _round_up(-(-T // n_chunks), 16)
    Tp = Tc * n_chunks

    bf16, f32 = jnp.bfloat16, jnp.float32
    x_bf = x.astype(bf16)
    if (B, T, D) != (Bp, Tp, Dp):      # skip the pad copy when not needed
        x_bf = jnp.pad(x_bf, ((0, Bp - B), (0, Tp - T), (0, Dp - D)))
    len2 = length.astype(jnp.int32).reshape(B, 1)
    if B != Bp:
        len2 = jnp.pad(len2, ((0, Bp - B), (0, 0)))     # padded rows: length 0

    grid = (Bp // Bt, n_chunks)

    # VMEM budget: double-buffered bf16 x tile + bf16 W_a + ~3 f32 h-chunk temps.
    est = (2 * Bt * Tc * Dp * 2
           + 2 * Dp * Hp * 2
           + 3 * Bt * Tc * Hp * 4
           + 4 * Bt * Hp * 4)
    vmem_limit = int(min(max(2 * est, 32 * 2**20), 96 * 2**20))
    # NOTE: on v7x pick time_chunk/batch_tile so `est` stays <= ~40 MiB
    # (64 MiB physical VMEM per TensorCore); the defaults do.

    flops = 2 * Bp * Tp * Dp * Hp + 4 * Bp * Tp * Hp
    transcendentals = Bp * Tp * Hp + Bp * Tp
    bytes_accessed = (2 * Bp * Tp * Dp + 2 * Dp * Hp
                      + 4 * (3 * Hp + 1 + Bp * Hp + Bp))

    hidden_p = pl.pallas_call(
        _sap_pool_kernel,
        out_shape=jax.ShapeDtypeStruct((Bp, Hp), f32),
        grid_spec=pltpu.PrefetchScalarGridSpec(
            num_scalar_prefetch=0,
            grid=grid,
            in_specs=[
                pl.BlockSpec((Bt, 1), lambda i, t: (i, 0)),          # lengths
                pl.BlockSpec((Bt, Tc, Dp), lambda i, t: (i, t, 0)),  # x chunk
                pl.BlockSpec((Dp, Hp), lambda i, t: (0, 0)),         # W_a
                pl.BlockSpec((1, Hp), lambda i, t: (0, 0)),          # b_a
                pl.BlockSpec((1, Hp), lambda i, t: (0, 0)),          # v^T
                pl.BlockSpec((1, 1), lambda i, t: (0, 0)),           # b_v
            ],
            out_specs=pl.BlockSpec((Bt, Hp), lambda i, t: (i, 0)),   # resident over t
            scratch_shapes=[
                pltpu.VMEM((Bt, 1), f32),    # running max
                pltpu.VMEM((Bt, 1), f32),    # running denom
                pltpu.VMEM((Bt, Hp), f32),   # running e-weighted sum
            ],
        ),
        compiler_params=pltpu.CompilerParams(
            dimension_semantics=("parallel", "arbitrary"),
            vmem_limit_bytes=vmem_limit),
        cost_estimate=pl.CostEstimate(
            flops=flops, transcendentals=transcendentals,
            bytes_accessed=bytes_accessed),
    )(len2, x_bf, prep["W_a"], prep["b_a"], prep["v_t"], prep["b_v"])

    # Classifier hoisted out of the per-tile kernel: one full-batch MXU GEMM.
    hidden = hidden_p[:B, :H]
    return hidden @ prep["W_l"] + prep["b_l"]


def reference_forward(x, length, params):
    """Pure-JAX reference with identical semantics (for correctness check)."""
    h = jnp.tanh(x @ params["W_a"] + params["b_a"])                     # (B, T, H)
    logits = h @ params["v"] + params["b_v"]                            # (B, T, 1)
    T = x.shape[1]
    valid = (jnp.arange(T)[None, :, None] < length[:, None, None])
    masked = jnp.where(valid, logits, -1e30)
    m = jnp.max(masked, axis=1, keepdims=True)
    e = jnp.where(valid, jnp.exp(masked - m), 0.0)
    alpha = e / jnp.sum(e, axis=1, keepdims=True)
    hidden = jnp.sum(alpha * h, axis=1)                                 # (B, H)
    return hidden @ params["W_l"] + params["b_l"]                       # (B, O)


def init_params(key, input_dim, hidden_dim, out_dim):
    k = jax.random.split(key, 6)
    s = 0.1
    return {
        "W_a": s * jax.random.normal(k[0], (input_dim, hidden_dim), jnp.float32),
        "b_a": s * jax.random.normal(k[1], (1, hidden_dim), jnp.float32),
        "v":   s * jax.random.normal(k[2], (hidden_dim, 1), jnp.float32),
        "b_v": s * jax.random.normal(k[3], (1, 1), jnp.float32),
        "W_l": s * jax.random.normal(k[4], (hidden_dim, out_dim), jnp.float32),
        "b_l": s * jax.random.normal(k[5], (1, out_dim), jnp.float32),
    }


if __name__ == "__main__":
    B, T, D, H, O = 2, 8, 32, 32, 16   # batch, seq, input_dim, hidden_dim, out_dim

    key = jax.random.PRNGKey(0)
    kx, kp = jax.random.split(key)
    x = jax.random.normal(kx, (B, T, D), jnp.float32)
    length = jnp.array([T, 5], dtype=jnp.int32)
    params = init_params(kp, D, H, O)

    prep = prepare_params(params)          # pad / cast weights once, not per call
    out = jax.block_until_ready(model_forward(x, length, prep))
    ref = reference_forward(x, length, params)

    assert out.shape == (B, O)
    # Slightly loose tolerance: x / W_a are streamed as bf16 (f32 accumulate).
    assert jnp.allclose(out, ref, atol=1e-2, rtol=1e-2), (out, ref)

    print("KERNEL_OK")
</pallas_src>

<mosaic_0001>
module attributes {stable_mosaic.version = 11 : i64} {
  func.func @_sap_pool_kernel(%arg0: i32, %arg1: i32, %arg2: memref<8x1xi32, #tpu.memory_space<vmem>>, %arg3: memref<8x16x128xbf16, #tpu.memory_space<vmem>>, %arg4: memref<128x128xbf16, #tpu.memory_space<vmem>>, %arg5: memref<1x128xf32, #tpu.memory_space<vmem>>, %arg6: memref<1x128xf32, #tpu.memory_space<vmem>>, %arg7: memref<1x1xf32, #tpu.memory_space<vmem>>, %arg8: memref<8x128xf32, #tpu.memory_space<vmem>>, %arg9: memref<8x1xf32, #tpu.memory_space<vmem>>, %arg10: memref<8x1xf32, #tpu.memory_space<vmem>>, %arg11: memref<8x128xf32, #tpu.memory_space<vmem>>) attributes {dimension_semantics = [#tpu.dimension_semantics<parallel>, #tpu.dimension_semantics<arbitrary>], iteration_bounds = array<i64: 1, 1>, scalar_prefetch = 0 : i64, scratch_operands = 3 : i64, tpu.core_type = #tpu.core_type<tc>, window_params = [{transform_indices = @transform_0, window_bounds = array<i64: 8, 1>}, {transform_indices = @transform_1, window_bounds = array<i64: 8, 16, 128>}, {pipeline_mode = #tpu.pipeline_mode<synchronous>, transform_indices = @transform_2, window_bounds = array<i64: 128, 128>}, {pipeline_mode = #tpu.pipeline_mode<synchronous>, transform_indices = @transform_3, window_bounds = array<i64: 1, 128>}, {pipeline_mode = #tpu.pipeline_mode<synchronous>, transform_indices = @transform_4, window_bounds = array<i64: 1, 128>}, {pipeline_mode = #tpu.pipeline_mode<synchronous>, transform_indices = @transform_5, window_bounds = array<i64: 1, 1>}, {transform_indices = @transform_6, window_bounds = array<i64: 8, 128>}]} {
    %c0_i32 = arith.constant 0 : i32
    %0 = arith.cmpi eq, %arg1, %c0_i32 : i32
    %1 = arith.extui %0 : i1 to i32
    %c0_i32_0 = arith.constant 0 : i32
    %2 = arith.cmpi ne, %1, %c0_i32_0 : i32
    scf.if %2 {
      %cst_32 = arith.constant -1.000000e+30 : f32
      %56 = vector.broadcast %cst_32 : f32 to vector<8x1xf32>
      %c0_33 = arith.constant 0 : index
      %c0_34 = arith.constant 0 : index
      %57 = vector.load %arg9[%c0_33, %c0_34] : memref<8x1xf32, #tpu.memory_space<vmem>>, vector<8x1xf32>
      tpu.vector_store %arg9[%c0_33, %c0_34], %56 {strides = array<i32>} : memref<8x1xf32, #tpu.memory_space<vmem>>, vector<8x1xf32>,
      %cst_35 = arith.constant 0.000000e+00 : f32
      %58 = vector.broadcast %cst_35 : f32 to vector<8x1xf32>
      %c0_36 = arith.constant 0 : index
      %c0_37 = arith.constant 0 : index
      %59 = vector.load %arg10[%c0_36, %c0_37] : memref<8x1xf32, #tpu.memory_space<vmem>>, vector<8x1xf32>
      tpu.vector_store %arg10[%c0_36, %c0_37], %58 {strides = array<i32>} : memref<8x1xf32, #tpu.memory_space<vmem>>, vector<8x1xf32>,
      %cst_38 = arith.constant 0.000000e+00 : f32
      %60 = vector.broadcast %cst_38 : f32 to vector<8x128xf32>
      %c0_39 = arith.constant 0 : index
      %c0_40 = arith.constant 0 : index
      %61 = vector.load %arg11[%c0_39, %c0_40] : memref<8x128xf32, #tpu.memory_space<vmem>>, vector<8x128xf32>
      tpu.vector_store %arg11[%c0_39, %c0_40], %60 {strides = array<i32>} : memref<8x128xf32, #tpu.memory_space<vmem>>, vector<8x128xf32>,
    } else {
    }
    %c0 = arith.constant 0 : index
    %c0_1 = arith.constant 0 : index
    %c0_2 = arith.constant 0 : index
    %3 = vector.load %arg3[%c0, %c0_1, %c0_2] : memref<8x16x128xbf16, #tpu.memory_space<vmem>>, vector<8x16x128xbf16>
    %4 = vector.shape_cast %3 : vector<8x16x128xbf16> to vector<128x128xbf16>
    %c0_3 = arith.constant 0 : index
    %c0_4 = arith.constant 0 : index
    %5 = vector.load %arg4[%c0_3, %c0_4] : memref<128x128xbf16, #tpu.memory_space<vmem>>, vector<128x128xbf16>
    %cst = arith.constant dense<0.000000e+00> : vector<128x128xf32>
    %6 = tpu.matmul %4, %5, %cst {dimension_numbers = #tpu.dot_dimension_numbers<[1], [0], [0], [1], [0, 0, 1, 1], [], []>} : vector<128x128xbf16>, vector<128x128xbf16>, vector<128x128xf32> -> vector<128x128xf32>
    %c0_5 = arith.constant 0 : index
    %c0_6 = arith.constant 0 : index
    %7 = vector.load %arg5[%c0_5, %c0_6] : memref<1x128xf32, #tpu.memory_space<vmem>>, vector<1x128xf32>
    %8 = vector.broadcast %7 : vector<1x128xf32> to vector<128x128xf32>
    %9 = arith.addf %6, %8 : vector<128x128xf32>
    %10 = math.tanh %9 : vector<128x128xf32>
    %11 = vector.shape_cast %10 : vector<128x128xf32> to vector<8x16x128xf32>
    %c0_7 = arith.constant 0 : index
    %c0_8 = arith.constant 0 : index
    %12 = vector.load %arg6[%c0_7, %c0_8] : memref<1x128xf32, #tpu.memory_space<vmem>>, vector<1x128xf32>
    %13 = vector.shape_cast %12 : vector<1x128xf32> to vector<1x1x128xf32>
    %14 = vector.broadcast %13 : vector<1x1x128xf32> to vector<8x16x128xf32>
    %15 = arith.mulf %11, %14 : vector<8x16x128xf32>
    %cst_9 = arith.constant dense<0.000000e+00> : vector<8x16xf32>
    %16 = vector.multi_reduction <add>, %15, %cst_9 [2] : vector<8x16x128xf32> to vector<8x16xf32>
    %c0_10 = arith.constant 0 : index
    %c0_11 = arith.constant 0 : index
    %17 = vector.load %arg7[%c0_10, %c0_11] : memref<1x1xf32, #tpu.memory_space<vmem>>, vector<1x1xf32>
    %18 = vector.broadcast %17 : vector<1x1xf32> to vector<8x16xf32>
    %19 = arith.addf %16, %18 : vector<8x16xf32>
    %c16_i32 = arith.constant 16 : i32
    %20 = arith.muli %arg1, %c16_i32 : i32
    %21 = tpu.iota {dimensions = array<i32: 1>} : vector<8x16xi32>
    %22 = vector.broadcast %20 : i32 to vector<8x16xi32>
    %23 = arith.addi %22, %21 : vector<8x16xi32>
    %c0_12 = arith.constant 0 : index
    %c0_13 = arith.constant 0 : index
    %24 = vector.load %arg2[%c0_12, %c0_13] : memref<8x1xi32, #tpu.memory_space<vmem>>, vector<8x1xi32>
    %25 = vector.broadcast %24 : vector<8x1xi32> to vector<8x16xi32>
    %26 = arith.cmpi slt, %23, %25 : vector<8x16xi32>
    %cst_14 = arith.constant -1.000000e+30 : f32
    %27 = vector.broadcast %cst_14 : f32 to vector<8x16xf32>
    %28 = arith.select %26, %19, %27 : vector<8x16xi1>, vector<8x16xf32>
    %c0_15 = arith.constant 0 : index
    %c0_16 = arith.constant 0 : index
    %29 = vector.load %arg9[%c0_15, %c0_16] : memref<8x1xf32, #tpu.memory_space<vmem>>, vector<8x1xf32>
    %cst_17 = arith.constant dense<0xFF800000> : vector<8xf32>
    %30 = vector.multi_reduction <maximumf>, %28, %cst_17 [1] : vector<8x16xf32> to vector<8xf32>
    %31 = vector.shape_cast %30 : vector<8xf32> to vector<8x1xf32>
    %32 = arith.maximumf %29, %31 : vector<8x1xf32>
    %33 = arith.subf %29, %32 : vector<8x1xf32>
    %34 = math.exp %33 : vector<8x1xf32>
    %35 = vector.broadcast %32 : vector<8x1xf32> to vector<8x16xf32>
    %36 = arith.subf %28, %35 : vector<8x16xf32>
    %37 = math.exp %36 : vector<8x16xf32>
    %c0_18 = arith.constant 0 : index
    %c0_19 = arith.constant 0 : index
    %38 = vector.load %arg10[%c0_18, %c0_19] : memref<8x1xf32, #tpu.memory_space<vmem>>, vector<8x1xf32>
    %39 = arith.mulf %34, %38 : vector<8x1xf32>
    %cst_20 = arith.constant dense<0.000000e+00> : vector<8xf32>
    %40 = vector.multi_reduction <add>, %37, %cst_20 [1] : vector<8x16xf32> to vector<8xf32>
    %41 = vector.shape_cast %40 : vector<8xf32> to vector<8x1xf32>
    %42 = arith.addf %39, %41 : vector<8x1xf32>
    %c0_21 = arith.constant 0 : index
    %c0_22 = arith.constant 0 : index
    %43 = vector.load %arg10[%c0_21, %c0_22] : memref<8x1xf32, #tpu.memory_space<vmem>>, vector<8x1xf32>
    tpu.vector_store %arg10[%c0_21, %c0_22], %42 {strides = array<i32>} : memref<8x1xf32, #tpu.memory_space<vmem>>, vector<8x1xf32>,
    %c0_23 = arith.constant 0 : index
    %c0_24 = arith.constant 0 : index
    %44 = vector.load %arg11[%c0_23, %c0_24] : memref<8x128xf32, #tpu.memory_space<vmem>>, vector<8x128xf32>
    %45 = vector.broadcast %34 : vector<8x1xf32> to vector<8x128xf32>
    %46 = arith.mulf %45, %44 : vector<8x128xf32>
    %47 = vector.shape_cast %37 : vector<8x16xf32> to vector<8x1x16xf32>
    "tpu.trace_start"() <{level = 10 : i32, message = "bqt,bth->bqh"}> : () -> ()
    %cst_25 = arith.constant dense<0.000000e+00> : vector<8x1x128xf32>
    %48 = tpu.matmul %47, %11, %cst_25 {dimension_numbers = #tpu.dot_dimension_numbers<[2], [1], [1], [2], [0, 0, 0, 1, 1, 2], [0], [0]>} : vector<8x1x16xf32>, vector<8x16x128xf32>, vector<8x1x128xf32> -> vector<8x1x128xf32>
    "tpu.trace_stop"() : () -> ()
    %49 = vector.shape_cast %48 : vector<8x1x128xf32> to vector<8x128xf32>
    %50 = arith.addf %46, %49 : vector<8x128xf32>
    %c0_26 = arith.constant 0 : index
    %c0_27 = arith.constant 0 : index
    %51 = vector.load %arg11[%c0_26, %c0_27] : memref<8x128xf32, #tpu.memory_space<vmem>>, vector<8x128xf32>
    tpu.vector_store %arg11[%c0_26, %c0_27], %50 {strides = array<i32>} : memref<8x128xf32, #tpu.memory_space<vmem>>, vector<8x128xf32>,
    %c0_28 = arith.constant 0 : index
    %c0_29 = arith.constant 0 : index
    %52 = vector.load %arg9[%c0_28, %c0_29] : memref<8x1xf32, #tpu.memory_space<vmem>>, vector<8x1xf32>
    tpu.vector_store %arg9[%c0_28, %c0_29], %32 {strides = array<i32>} : memref<8x1xf32, #tpu.memory_space<vmem>>, vector<8x1xf32>,
    %c0_i32_30 = arith.constant 0 : i32
    %53 = arith.cmpi eq, %arg1, %c0_i32_30 : i32
    %54 = arith.extui %53 : i1 to i32
    %c0_i32_31 = arith.constant 0 : i32
    %55 = arith.cmpi ne, %54, %c0_i32_31 : i32
    scf.if %55 {
      %c0_32 = arith.constant 0 : index
      %c0_33 = arith.constant 0 : index
      %56 = vector.load %arg10[%c0_32, %c0_33] : memref<8x1xf32, #tpu.memory_space<vmem>>, vector<8x1xf32>
      %cst_34 = arith.constant 1.000000e-30 : f32
      %57 = vector.broadcast %cst_34 : f32 to vector<8x1xf32>
      %58 = arith.maximumf %56, %57 : vector<8x1xf32>
      %59 = tpu.reciprocal %58 : vector<8x1xf32> -> vector<8x1xf32>
      %c0_35 = arith.constant 0 : index
      %c0_36 = arith.constant 0 : index
      %60 = vector.load %arg11[%c0_35, %c0_36] : memref<8x128xf32, #tpu.memory_space<vmem>>, vector<8x128xf32>
      %61 = vector.broadcast %59 : vector<8x1xf32> to vector<8x128xf32>
      %62 = arith.mulf %60, %61 : vector<8x128xf32>
      %c0_37 = arith.constant 0 : index
      %c0_38 = arith.constant 0 : index
      %63 = vector.load %arg8[%c0_37, %c0_38] : memref<8x128xf32, #tpu.memory_space<vmem>>, vector<8x128xf32>
      tpu.vector_store %arg8[%c0_37, %c0_38], %62 {strides = array<i32>} : memref<8x128xf32, #tpu.memory_space<vmem>>, vector<8x128xf32>,
    } else {
    }
    return
  }
  func.func @transform_0(%arg0: i32, %arg1: i32) -> (i32, i32) {
    %c0_i32 = arith.constant 0 : i32
    %c0_i32_0 = arith.constant 0 : i32
    return %arg0, %c0_i32 : i32, i32
  }
  func.func @transform_1(%arg0: i32, %arg1: i32) -> (i32, i32, i32) {
    %c0_i32 = arith.constant 0 : i32
    %c0_i32_0 = arith.constant 0 : i32
    return %arg0, %arg1, %c0_i32 : i32, i32, i32
  }
  func.func @transform_2(%arg0: i32, %arg1: i32) -> (i32, i32) {
    %c0_i32 = arith.constant 0 : i32
    %c0_i32_0 = arith.constant 0 : i32
    %c0_i32_1 = arith.constant 0 : i32
    return %c0_i32, %c0_i32_0 : i32, i32
  }
  func.func @transform_3(%arg0: i32, %arg1: i32) -> (i32, i32) {
    %c0_i32 = arith.constant 0 : i32
    %c0_i32_0 = arith.constant 0 : i32
    %c0_i32_1 = arith.constant 0 : i32
    return %c0_i32, %c0_i32_0 : i32, i32
  }
  func.func @transform_4(%arg0: i32, %arg1: i32) -> (i32, i32) {
    %c0_i32 = arith.constant 0 : i32
    %c0_i32_0 = arith.constant 0 : i32
    %c0_i32_1 = arith.constant 0 : i32
    return %c0_i32, %c0_i32_0 : i32, i32
  }
  func.func @transform_5(%arg0: i32, %arg1: i32) -> (i32, i32) {
    %c0_i32 = arith.constant 0 : i32
    %c0_i32_0 = arith.constant 0 : i32
    %c0_i32_1 = arith.constant 0 : i32
    return %c0_i32, %c0_i32_0 : i32, i32
  }
  func.func @transform_6(%arg0: i32, %arg1: i32) -> (i32, i32) {
    %c0_i32 = arith.constant 0 : i32
    %c0_i32_0 = arith.constant 0 : i32
    return %arg0, %c0_i32 : i32, i32
  }
}

</mosaic_0001>

<llo_original>
// kernel: tpu_custom_call.1
$region0: #{tpu_custom_call.1}
  #allocation0 [shape = 'u32[]', space=smem, size = 0x4, offset = 0x4, fixed_abs, tag = 'smem constant byte address 0x4 - core index']
  #allocation1 [shape = 'u32[144,128]{1,0:T(1,128)}', space=vmem, size = 0x12000, scoped, tag = 'internal scratch']
  #allocation2 [shape = 'f32[8,1]{1,0:T(8,128)}', space=vmem, size = 0x1000, scoped, tag = 'scratch operand']
  #allocation3 [shape = 'f32[8,1]{1,0:T(8,128)}', space=vmem, size = 0x1000, scoped, tag = 'scratch operand']
  #allocation4 [shape = 'f32[8,128]{1,0:T(8,128)}', space=vmem, size = 0x1000, scoped, tag = 'scratch operand']
  #allocation5 [shape = 'f32[1,1]{1,0:T(1,128)S(1)}', space=vmem, size = 0x200, scoped, tag = 'scoped memory for tpu_custom_call.1']
  %s0 = inlined_call_operand.vmem [shape: s32[8,1], index: 0, kind: input, shape index: {}]
  %s1 = inlined_call_operand.hbm [shape: bf16[8,16,128], index: 1, kind: input, shape index: {}]
  %s2 = inlined_call_operand.hbm [shape: bf16[128,128], index: 2, kind: input, shape index: {}]
  %s3 = inlined_call_operand.vmem [shape: f32[1,128], index: 3, kind: input, shape index: {}]
  %s4 = inlined_call_operand.vmem [shape: f32[1,128], index: 4, kind: input, shape index: {}]
  %s5 = inlined_call_operand.<no memory space> [shape: f32[1,1], index: 5, kind: input, shape index: {}]
  %s6 = inlined_call_operand.hbm [shape: f32[8,128], index: 6, kind: output, shape index: {}]
  %s7 = sld [smem:[#allocation0]]
  $region50: #{tpu_custom_call.1} parent=0
    _
  %s9 = ssub.s32 1, %s7
  %s10 = scalar_select 0, %s9, %s7
  %v11 = vstv %s5
  %12 = vst [vmem:[#allocation5] sm:$0x1] %v11
  $region1: #{tpu_custom_call.1} parent=0
    #allocation6 [shape = 'u8[32768]{0}', space=vmem, size = 0x8000, scoped, tag = 'input window, operand 1, single buffered']
    #allocation7 [shape = 's32[1]{0}', space=sflag, size = 0x4, scoped, tag = 'scoped memory for tpu_custom_call.1']
    #allocation8 [shape = 's32[1]{0}', space=sflag, size = 0x4, scoped, tag = 'scoped memory for tpu_custom_call.1']
    #allocation9 [shape = 'u8[32768]{0}', space=vmem, size = 0x8000, scoped, tag = 'input window, operand 2, single buffered']
    #allocation10 [shape = 's32[1]{0}', space=sflag, size = 0x4, scoped, tag = 'scoped memory for tpu_custom_call.1']
    #allocation11 [shape = 'u8[4096]{0}', space=vmem, size = 0x1000, scoped, tag = 'output window, operand 0, single buffered']
    %13 = vsyncpa [#allocation7], 0
    %14 = vsyncpa [#allocation10], 0
    %15 = vsyncpa [#allocation8], 0
    // Predicated region
    $region2: #{tpu_custom_call.1} parent=1 // pred_check
      _
    $region3: #{tpu_custom_call.1} parent=1 // pred_check_branch
      %17 = sbr.rel (0) target = $region5
    $region4: #{tpu_custom_call.1} parent=1 // pred_region
      _
    $region5: #{tpu_custom_call.1} parent=1 // pred_fallthru
      _
    // Predicated region
    $region6: #{tpu_custom_call.1} parent=1 // pred_check
      _
    $region7: #{tpu_custom_call.1} parent=1 // pred_check_branch
      %19 = sbr.rel (0) target = $region9
    $region8: #{tpu_custom_call.1} parent=1 // pred_region
      %s21 = ssub.s32 1024, 1024
      %22 = vsyncadd [#allocation7], %s21
      %s23 = sshll.u32 [#allocation6], 4
      %s24 = int_to_ptr.vmem [resolvable:$true] %s23
      %29 = dma.hbm_to_vmem [thread:$0]  %s1, 1024, %s24, [#allocation7], 64, 64, 4
    $region9: #{tpu_custom_call.1} parent=1 // pred_fallthru
      _
    // Predicated region
    $region10: #{tpu_custom_call.1} parent=1 // pred_check
      _
    $region11: #{tpu_custom_call.1} parent=1 // pred_check_branch
      %31 = sbr.rel (0) target = $region13
    $region12: #{tpu_custom_call.1} parent=1 // pred_region
      %s33 = ssub.s32 1024, 1024
      %34 = vsyncadd [#allocation10], %s33
      %s35 = sshll.u32 [#allocation9], 4
      %s36 = int_to_ptr.vmem [resolvable:$true] %s35
      %41 = dma.hbm_to_vmem [thread:$0]  %s2, 1024, %s36, [#allocation10], 64, 64, 4
    $region13: #{tpu_custom_call.1} parent=1 // pred_fallthru
      _
    // Predicated region
    $region14: #{tpu_custom_call.1} parent=1 // pred_check
      _
    $region15: #{tpu_custom_call.1} parent=1 // pred_check_branch
      %43 = sbr.rel (0) target = $region17
    $region16: #{tpu_custom_call.1} parent=1 // pred_region
      _
    $region17: #{tpu_custom_call.1} parent=1 // pred_fallthru
      _
    // Predicated region
    $region18: #{tpu_custom_call.1} parent=1 // pred_check
      _
    $region19: #{tpu_custom_call.1} parent=1 // pred_check_branch
      %45 = sbr.rel (0) target = $region21
    $region20: #{tpu_custom_call.1} parent=1 // pred_region
      _
    $region21: #{tpu_custom_call.1} parent=1 // pred_fallthru
      _
    // Predicated region
    $region22: #{tpu_custom_call.1} parent=1 // pred_check
      _
    $region23: #{tpu_custom_call.1} parent=1 // pred_check_branch
      %47 = sbr.rel (0) target = $region25
    $region24: #{tpu_custom_call.1} parent=1 // pred_region
      _
    $region25: #{tpu_custom_call.1} parent=1 // pred_fallthru
      _
    // Predicated region
    $region26: #{tpu_custom_call.1} parent=1 // pred_check
      _
    $region27: #{tpu_custom_call.1} parent=1 // pred_check_branch
      %49 = sbr.rel (0) target = $region29
    $region28: #{tpu_custom_call.1} parent=1 // pred_region
      %50 = dma.done [#allocation7], 1024
    $region29: #{tpu_custom_call.1} parent=1 // pred_fallthru
      _
    // Predicated region
    $region30: #{tpu_custom_call.1} parent=1 // pred_check
      _
    $region31: #{tpu_custom_call.1} parent=1 // pred_check_branch
      %52 = sbr.rel (0) target = $region33
    $region32: #{tpu_custom_call.1} parent=1 // pred_region
      %53 = dma.done [#allocation10], 1024
    $region33: #{tpu_custom_call.1} parent=1 // pred_fallthru
      _
    %p55 = scmp.eq.s32.totalorder 0, 0
    // Predicated region
    $region34: #{tpu_custom_call.1} parent=1 // pred_check
      %p56 = pneg %p55
    $region35: #{tpu_custom_call.1} parent=1 // pred_check_branch
      %58 = sbr.rel (%p56) target = $region37
    $region36: #{tpu_custom_call.1} parent=1 // pred_region
      %vm59 = vcmask 7168
      %60 = vst.msk [vmem:[#allocation2] sm:$0xff] %vm59, -1e+30
      %61 = vst.msk [vmem:[#allocation3] sm:$0xff] %vm59, 0.0
      %62 = vst [vmem:[#allocation4] sm:$0xff] 0.0
    $region37: #{tpu_custom_call.1} parent=1 // pred_fallthru
      _
    %v63 = vld [vmem:[#allocation6] sm:$0xf]
    %v64 = vld [vmem:[#allocation6 + $0x4] sm:$0xf]
    %v65 = vld [vmem:[#allocation6 + $0x8] sm:$0xf]
    %v66 = vld [vmem:[#allocation6 + $0xc] sm:$0xf]
    %v67 = vld [vmem:[#allocation6 + $0x10] sm:$0xf]
    %v68 = vld [vmem:[#allocation6 + $0x14] sm:$0xf]
    %v69 = vld [vmem:[#allocation6 + $0x18] sm:$0xf]
    %v70 = vld [vmem:[#allocation6 + $0x1c] sm:$0xf]
    %v71 = vld [vmem:[#allocation6 + $0x20] sm:$0xf]
    %v72 = vld [vmem:[#allocation6 + $0x24] sm:$0xf]
    %v73 = vld [vmem:[#allocation6 + $0x28] sm:$0xf]
    %v74 = vld [vmem:[#allocation6 + $0x2c] sm:$0xf]
    %v75 = vld [vmem:[#allocation6 + $0x30] sm:$0xf]
    %v76 = vld [vmem:[#allocation6 + $0x34] sm:$0xf]
    %v77 = vld [vmem:[#allocation6 + $0x38] sm:$0xf]
    %v78 = vld [vmem:[#allocation6 + $0x3c] sm:$0xf]
    %v79 = vld [vmem:[#allocation9] sm:$0xf]
    %v80 = vld [vmem:[#allocation9 + $0x4] sm:$0xf]
    %v81 = vld [vmem:[#allocation9 + $0x8] sm:$0xf]
    %v82 = vld [vmem:[#allocation9 + $0xc] sm:$0xf]
    %v83 = vld [vmem:[#allocation9 + $0x10] sm:$0xf]
    %v84 = vld [vmem:[#allocation9 + $0x14] sm:$0xf]
    %v85 = vld [vmem:[#allocation9 + $0x18] sm:$0xf]
    %v86 = vld [vmem:[#allocation9 + $0x1c] sm:$0xf]
    %v87 = vld [vmem:[#allocation9 + $0x20] sm:$0xf]
    %v88 = vld [vmem:[#allocation9 + $0x24] sm:$0xf]
    %v89 = vld [vmem:[#allocation9 + $0x28] sm:$0xf]
    %v90 = vld [vmem:[#allocation9 + $0x2c] sm:$0xf]
    %v91 = vld [vmem:[#allocation9 + $0x30] sm:$0xf]
    %v92 = vld [vmem:[#allocation9 + $0x34] sm:$0xf]
    %v93 = vld [vmem:[#allocation9 + $0x38] sm:$0xf]
    %v94 = vld [vmem:[#allocation9 + $0x3c] sm:$0xf]
    %v95 = vld [vmem:[%s3] sm:$0x1]
    %v97 = vlaneseq
    %v98 = vshrl.u32 %v97, 7
    %v99 = vsub.s32 0, %v98
    %v100 = vrot.slane %v95, %v99
    %v118 = vunpack.c.l.b16 %v63
    %v119 = vunpack.c.l.b16 %v64
    %v120 = vunpack.c.l.b16 %v65
    %v121 = vunpack.c.l.b16 %v66
    %v122 = vunpack.c.l.b16 %v67
    %v123 = vunpack.c.l.b16 %v68
    %v124 = vunpack.c.l.b16 %v69
    %v125 = vunpack.c.l.b16 %v70
    %v126 = vunpack.c.l.b16 %v71
    %v127 = vunpack.c.l.b16 %v72
    %v128 = vunpack.c.l.b16 %v73
    %v129 = vunpack.c.l.b16 %v74
    %v130 = vunpack.c.l.b16 %v75
    %v131 = vunpack.c.l.b16 %v76
    %v132 = vunpack.c.l.b16 %v77
    %v133 = vunpack.c.l.b16 %v78
    %v134 = vpack.c.b16 %v119, %v118
    %v135 = vpack.c.b16 %v121, %v120
    %v136 = vpack.c.b16 %v123, %v122
    %v137 = vpack.c.b16 %v125, %v124
    %v138 = vpack.c.b16 %v127, %v126
    %v139 = vpack.c.b16 %v129, %v128
    %v140 = vpack.c.b16 %v131, %v130
    %v141 = vpack.c.b16 %v133, %v132
    %v166 = vunpack.c.l.b16 %v79
    %v167 = vunpack.c.l.b16 %v80
    %v168 = vunpack.c.l.b16 %v81
    %v169 = vunpack.c.l.b16 %v82
    %v170 = vunpack.c.l.b16 %v83
    %v171 = vunpack.c.l.b16 %v84
    %v172 = vunpack.c.l.b16 %v85
    %v173 = vunpack.c.l.b16 %v86
    %v174 = vunpack.c.l.b16 %v87
    %v175 = vunpack.c.l.b16 %v88
    %v176 = vunpack.c.l.b16 %v89
    %v177 = vunpack.c.l.b16 %v90
    %v178 = vunpack.c.l.b16 %v91
    %v179 = vunpack.c.l.b16 %v92
    %v180 = vunpack.c.l.b16 %v93
    %v181 = vunpack.c.l.b16 %v94
    %v182 = vpack.c.b16 %v167, %v166
    %v183 = vpack.c.b16 %v169, %v168
    %v184 = vpack.c.b16 %v171, %v170
    %v185 = vpack.c.b16 %v173, %v172
    %v186 = vpack.c.b16 %v175, %v174
    %v187 = vpack.c.b16 %v177, %v176
    %v188 = vpack.c.b16 %v179, %v178
    %v189 = vpack.c.b16 %v181, %v180
    %198 = vmatprep.subr.bf16.mxu0 0
    %199 = vmatpush1.bf16.msra.mxu0 %v182
    %200 = vmatprep.subr.bf16.mxu0 0
    %201 = vmatpush1.bf16.msra.mxu0 %v183
    %202 = vmatprep.subr.bf16.mxu0 0
    %203 = vmatpush1.bf16.msra.mxu0 %v184
    %204 = vmatprep.subr.bf16.mxu0 0
    %205 = vmatpush1.bf16.msra.mxu0 %v185
    %206 = vmatprep.subr.bf16.mxu0 0
    %207 = vmatpush1.bf16.msra.mxu0 %v186
    %208 = vmatprep.subr.bf16.mxu0 0
    %209 = vmatpush1.bf16.msra.mxu0 %v187
    %210 = vmatprep.subr.bf16.mxu0 0
    %211 = vmatpush1.bf16.msra.mxu0 %v188
    %212 = vmatprep.subr.bf16.mxu0 0
    %213 = vmatpush1.bf16.msra.mxu0 %v189
    %214 = vmatprep.subr.bf16.mxu0 0
    %215 = vmatpush1.bf16.msra.mxu0 0
    %216 = vmatprep.subr.bf16.mxu0 0
    %217 = vmatpush1.bf16.msra.mxu0 0
    %218 = vmatprep.subr.bf16.mxu0 0
    %219 = vmatpush1.bf16.msra.mxu0 0
    %220 = vmatprep.subr.bf16.mxu0 0
    %221 = vmatpush1.bf16.msra.mxu0 0
    %222 = vmatprep.subr.bf16.mxu0 0
    %223 = vmatpush1.bf16.msra.mxu0 0
    %224 = vmatprep.subr.bf16.mxu0 0
    %225 = vmatpush1.bf16.msra.mxu0 0
    %226 = vmatprep.subr.bf16.mxu0 0
    %227 = vmatpush1.bf16.msra.mxu0 0
    %228 = vmatprep.subr.bf16.mxu0 0
    %229 = vmatpush1.bf16.msra.mxu0 0
    %230 = vmatprep.mubr.bf16.mxu0 0
    %231 = vmatmul.mubr.bf16.gmra.mrb[0].mxu0 %v134
    %v232 = vpop.f32.mrb[0].mxu0
    %v233 = vadd.f32 %v100, %v232
    %v234 = vpop.f32.mrb[0].mxu0
    %v235 = vpop.f32.mrb[0].mxu0
    %v236 = vadd.f32 %v100, %v235
    %v237 = vpop.f32.mrb[0].mxu0
    %238 = vmatprep.mubr.bf16.mxu0 0
    %239 = vmatmul.mubr.bf16.gmra.mrb[0].mxu0 %v135
    %v240 = vpop.f32.mrb[0].mxu0
    %v241 = vadd.f32 %v100, %v240
    %v242 = vpop.f32.mrb[0].mxu0
    %v243 = vpop.f32.mrb[0].mxu0
    %v244 = vadd.f32 %v100, %v243
    %v245 = vpop.f32.mrb[0].mxu0
    %246 = vmatprep.mubr.bf16.mxu0 0
    %247 = vmatmul.mubr.bf16.gmra.mrb[0].mxu0 %v136
    %v248 = vpop.f32.mrb[0].mxu0
    %v249 = vadd.f32 %v100, %v248
    %v250 = vpop.f32.mrb[0].mxu0
    %v251 = vpop.f32.mrb[0].mxu0
    %v252 = vadd.f32 %v100, %v251
    %v253 = vpop.f32.mrb[0].mxu0
    %254 = vmatprep.mubr.bf16.mxu0 0
    %255 = vmatmul.mubr.bf16.gmra.mrb[0].mxu0 %v137
    %v256 = vpop.f32.mrb[0].mxu0
    %v257 = vadd.f32 %v100, %v256
    %v258 = vpop.f32.mrb[0].mxu0
    %v259 = vpop.f32.mrb[0].mxu0
    %v260 = vadd.f32 %v100, %v259
    %v261 = vpop.f32.mrb[0].mxu0
    %262 = vmatprep.mubr.bf16.mxu0 0
    %263 = vmatmul.mubr.bf16.gmra.mrb[0].mxu0 %v138
    %v264 = vpop.f32.mrb[0].mxu0
    %v265 = vadd.f32 %v100, %v264
    %v266 = vpop.f32.mrb[0].mxu0
    %v267 = vpop.f32.mrb[0].mxu0
    %v268 = vadd.f32 %v100, %v267
    %v269 = vpop.f32.mrb[0].mxu0
    %270 = vmatprep.mubr.bf16.mxu0 0
    %271 = vmatmul.mubr.bf16.gmra.mrb[0].mxu0 %v139
    %v272 = vpop.f32.mrb[0].mxu0
    %v273 = vadd.f32 %v100, %v272
    %v274 = vpop.f32.mrb[0].mxu0
    %v275 = vpop.f32.mrb[0].mxu0
    %v276 = vadd.f32 %v100, %v275
    %v277 = vpop.f32.mrb[0].mxu0
    %278 = vmatprep.mubr.bf16.mxu0 0
    %279 = vmatmul.mubr.bf16.gmra.mrb[0].mxu0 %v140
    %v280 = vpop.f32.mrb[0].mxu0
    %v281 = vadd.f32 %v100, %v280
    %v282 = vpop.f32.mrb[0].mxu0
    %v283 = vpop.f32.mrb[0].mxu0
    %v284 = vadd.f32 %v100, %v283
    %v285 = vpop.f32.mrb[0].mxu0
    %286 = vmatprep.mubr.bf16.mxu0 0
    %287 = vmatmul.mubr.bf16.gmra.mrb[0].mxu0 %v141
    %v288 = vpop.f32.mrb[0].mxu0
    %v289 = vadd.f32 %v100, %v288
    %v290 = vpop.f32.mrb[0].mxu0
    %v291 = vpop.f32.mrb[0].mxu0
    %v292 = vadd.f32 %v100, %v291
    %v293 = vpop.f32.mrb[0].mxu0
    %294 = vdwg.mxu0
    %v295 = vtanh.pop %v233
    %v296 = vtanh.pop %v236
    %v297 = vtanh.pop %v241
    %v298 = vtanh.pop %v244
    %v299 = vtanh.pop %v249
    %v300 = vtanh.pop %v252
    %v301 = vtanh.pop %v257
    %v302 = vtanh.pop %v260
    %v303 = vtanh.pop %v265
    %v304 = vtanh.pop %v268
    %v305 = vtanh.pop %v273
    %v306 = vtanh.pop %v276
    %v307 = vtanh.pop %v281
    %v308 = vtanh.pop %v284
    %v309 = vtanh.pop %v289
    %v310 = vtanh.pop %v292
    %v311 = vld [vmem:[%s4] sm:$0x1]
    %v313 = vlaneseq
    %v314 = vshrl.u32 %v313, 7
    %v315 = vsub.s32 0, %v314
    %v316 = vrot.slane %v311, %v315
    %v318 = vmul.f32 %v295, %v316
    %v319 = vmul.f32 %v296, %v316
    %v320 = vmul.f32 %v297, %v316
    %v321 = vmul.f32 %v298, %v316
    %v322 = vmul.f32 %v299, %v316
    %v323 = vmul.f32 %v300, %v316
    %v324 = vmul.f32 %v301, %v316
    %v325 = vmul.f32 %v302, %v316
    %v326 = vmul.f32 %v303, %v316
    %v327 = vmul.f32 %v304, %v316
    %v328 = vmul.f32 %v305, %v316
    %v329 = vmul.f32 %v306, %v316
    %v330 = vmul.f32 %v307, %v316
    %v331 = vmul.f32 %v308, %v316
    %v332 = vmul.f32 %v309, %v316
    %v333 = vmul.f32 %v310, %v316
    %334 = vadd.xlane.f32.xlu0 %v318
    %v335 = vpop.xlane.xlu0 %334
    %336 = vadd.xlane.f32.xlu0 %v319
    %v337 = vpop.xlane.xlu0 %336
    %338 = vadd.xlane.f32.xlu0 %v320
    %v339 = vpop.xlane.xlu0 %338
    %340 = vadd.xlane.f32.xlu0 %v321
    %v341 = vpop.xlane.xlu0 %340
    %342 = vadd.xlane.f32.xlu0 %v322
    %v343 = vpop.xlane.xlu0 %342
    %344 = vadd.xlane.f32.xlu0 %v323
    %v345 = vpop.xlane.xlu0 %344
    %346 = vadd.xlane.f32.xlu0 %v324
    %v347 = vpop.xlane.xlu0 %346
    %348 = vadd.xlane.f32.xlu0 %v325
    %v349 = vpop.xlane.xlu0 %348
    %350 = vadd.xlane.f32.xlu0 %v326
    %v351 = vpop.xlane.xlu0 %350
    %352 = vadd.xlane.f32.xlu0 %v327
    %v353 = vpop.xlane.xlu0 %352
    %354 = vadd.xlane.f32.xlu0 %v328
    %v355 = vpop.xlane.xlu0 %354
    %356 = vadd.xlane.f32.xlu0 %v329
    %v357 = vpop.xlane.xlu0 %356
    %358 = vadd.xlane.f32.xlu0 %v330
    %v359 = vpop.xlane.xlu0 %358
    %360 = vadd.xlane.f32.xlu0 %v331
    %v361 = vpop.xlane.xlu0 %360
    %362 = vadd.xlane.f32.xlu0 %v332
    %v363 = vpop.xlane.xlu0 %362
    %364 = vadd.xlane.f32.xlu0 %v333
    %v365 = vpop.xlane.xlu0 %364
    %v366 = vld [vmem:[#allocation5] sm:$0x1]
    %v368 = vlaneseq
    %v369 = vshrl.u32 %v368, 7
    %v370 = vsub.s32 0, %v369
    %v371 = vrot.slane %v366, %v370
    %372 = vset.pattern.permute.xlu0 0
    %373 = vperm.xlu0 %372, %v371
    %v374 = vpop.permute.xlu0 %373
    %v376 = vadd.f32 %v335, %v374
    %v377 = vadd.f32 %v337, %v374
    %v378 = vadd.f32 %v339, %v374
    %v379 = vadd.f32 %v341, %v374
    %v380 = vadd.f32 %v343, %v374
    %v381 = vadd.f32 %v345, %v374
    %v382 = vadd.f32 %v347, %v374
    %v383 = vadd.f32 %v349, %v374
    %v384 = vadd.f32 %v351, %v374
    %v385 = vadd.f32 %v353, %v374
    %v386 = vadd.f32 %v355, %v374
    %v387 = vadd.f32 %v357, %v374
    %v388 = vadd.f32 %v359, %v374
    %v389 = vadd.f32 %v361, %v374
    %v390 = vadd.f32 %v363, %v374
    %v391 = vadd.f32 %v365, %v374
    %s392 = smul.u32 0, 16
    %v393 = vlaneseq
    %v394 = vand.u32 %v393, 127
    %v395 = vstv %s392
    %v396 = vadd.s32 %v395, %v394
    %v397 = vld [vmem:[%s0] sm:$0xff]
    %398 = vset.pattern.permute.xlu0 0
    %399 = vperm.xlu0 %398, %v397
    %v400 = vpop.permute.xlu0 %399
    %vm401 = vcmp.lt.s32.totalorder %v396, %v400
    %v418 = vlaneseq
    %v419 = vshrl.u32 %v418, 7
    %v420 = vsub.s32 %v394, %v419
    %v421 = vrot.slane %v376, %v420
    %v422 = vadd.s32 %v394, 4294967288
    %v423 = vlaneseq
    %v424 = vshrl.u32 %v423, 7
    %v425 = vsub.s32 %v422, %v424
    %v426 = vrot.slane %v377, %v425
    %vm427 = vcmask 130112
    %v428 = vsel %vm427, %v426, %v421
    %v429 = vlaneseq
    %v430 = vshrl.u32 %v429, 7
    %v431 = vsub.s32 %v394, %v430
    %v432 = vrot.slane %v378, %v431
    %v433 = vlaneseq
    %v434 = vshrl.u32 %v433, 7
    %v435 = vsub.s32 %v422, %v434
    %v436 = vrot.slane %v379, %v435
    %v437 = vsel %vm427, %v436, %v432
    %v438 = vlaneseq
    %v439 = vshrl.u32 %v438, 7
    %v440 = vsub.s32 %v394, %v439
    %v441 = vrot.slane %v380, %v440
    %v442 = vlaneseq
    %v443 = vshrl.u32 %v442, 7
    %v444 = vsub.s32 %v422, %v443
    %v445 = vrot.slane %v381, %v444
    %v446 = vsel %vm427, %v445, %v441
    %v447 = vlaneseq
    %v448 = vshrl.u32 %v447, 7
    %v449 = vsub.s32 %v394, %v448
    %v450 = vrot.slane %v382, %v449
    %v451 = vlaneseq
    %v452 = vshrl.u32 %v451, 7
    %v453 = vsub.s32 %v422, %v452
    %v454 = vrot.slane %v383, %v453
    %v455 = vsel %vm427, %v454, %v450
    %v456 = vlaneseq
    %v457 = vshrl.u32 %v456, 7
    %v458 = vsub.s32 %v394, %v457
    %v459 = vrot.slane %v384, %v458
    %v460 = vlaneseq
    %v461 = vshrl.u32 %v460, 7
    %v462 = vsub.s32 %v422, %v461
    %v463 = vrot.slane %v385, %v462
    %v464 = vsel %vm427, %v463, %v459
    %v465 = vlaneseq
    %v466 = vshrl.u32 %v465, 7
    %v467 = vsub.s32 %v394, %v466
    %v468 = vrot.slane %v386, %v467
    %v469 = vlaneseq
    %v470 = vshrl.u32 %v469, 7
    %v471 = vsub.s32 %v422, %v470
    %v472 = vrot.slane %v387, %v471
    %v473 = vsel %vm427, %v472, %v468
    %v474 = vlaneseq
    %v475 = vshrl.u32 %v474, 7
    %v476 = vsub.s32 %v394, %v475
    %v477 = vrot.slane %v388, %v476
    %v478 = vlaneseq
    %v479 = vshrl.u32 %v478, 7
    %v480 = vsub.s32 %v422, %v479
    %v481 = vrot.slane %v389, %v480
    %v482 = vsel %vm427, %v481, %v477
    %v483 = vlaneseq
    %v484 = vshrl.u32 %v483, 7
    %v485 = vsub.s32 %v394, %v484
    %v486 = vrot.slane %v390, %v485
    %v487 = vlaneseq
    %v488 = vshrl.u32 %v487, 7
    %v489 = vsub.s32 %v422, %v488
    %v490 = vrot.slane %v391, %v489
    %v491 = vsel %vm427, %v490, %v486
    %vm492 = vcmask 1041409
    %v493 = vsel %vm492, %v437, %v428
    %vm494 = vcmask 1042434
    %v495 = vsel %vm494, %v446, %v493
    %vm496 = vcmask 1043459
    %v497 = vsel %vm496, %v455, %v495
    %vm498 = vcmask 1044484
    %v499 = vsel %vm498, %v464, %v497
    %vm500 = vcmask 1045509
    %v501 = vsel %vm500, %v473, %v499
    %vm502 = vcmask 1046534
    %v503 = vsel %vm502, %v482, %v501
    %vm504 = vcmask 1047559
    %v505 = vsel %vm504, %v491, %v503
    %v507 = vsel %vm401, %v505, -1e+30
    %v508 = vld [vmem:[#allocation2] sm:$0xff]
    %vm509 = vcmask 130048
    %v510 = vsel %vm509, %v507, -inf
    %511 = vmax.xlane.f32.xlu0 %v510
    %v512 = vpop.xlane.xlu0 %511
    %v513 = vmax.f32 %v508, %v512
    %v514 = vsub.f32 %v508, %v513
    %v515 = vmul.f32 %v514, 1.442695
    %v516 = vpow.pop %v515
    %518 = vset.pattern.permute.xlu0 0
    %519 = vperm.xlu0 %518, %v513
    %v520 = vpop.permute.xlu0 %519
    %v522 = vsub.f32 %v507, %v520
    %v523 = vmul.f32 %v522, 1.442695
    %v524 = vpow.pop %v523
    %v525 = vld [vmem:[#allocation3] sm:$0xff]
    %v526 = vmul.f32 %v516, %v525
    %v527 = vsel %vm509, %v524, 0.0
    %528 = vadd.xlane.f32.xlu0 %v527
    %v529 = vpop.xlane.xlu0 %528
    %v530 = vadd.f32 %v526, %v529
    %vm531 = vcmask 7168
    %532 = vst.msk [vmem:[#allocation3] sm:$0xff] %vm531, %v530
    %v533 = vld [vmem:[#allocation4] sm:$0xff]
    %535 = vset.pattern.permute.xlu0 0
    %536 = vperm.xlu0 %535, %v516
    %v537 = vpop.permute.xlu0 %536
    %v539 = vmul.f32 %v537, %v533
    %v541 = vcombine.high %v524, %v524
    %v543 = vunpack.c.l.s4 1966171168
    %v544 = vunpack.c.0.s8 %v543
    %v545 = vlaneseq
    %v546 = vshrl.u32 %v545, 7
    %v547 = vsub.s32 %v544, %v546
    %v548 = vrot.slane %v524, %v547
    %v550 = vunpack.c.l.s4 1966171168
    %v551 = vunpack.c.0.s8 %v550
    %v552 = vlaneseq
    %v553 = vshrl.u32 %v552, 7
    %v554 = vsub.s32 %v551, %v553
    %v555 = vrot.slane %v541, %v554
    %v556 = vcombine.high %v548, %v548
    %v557 = vcombine.high %v555, %v555
    %v559 = vunpack.c.l.s4 1966171168
    %v560 = vunpack.c.0.s8 %v559
    %v561 = vlaneseq
    %v562 = vshrl.u32 %v561, 7
    %v563 = vsub.s32 %v560, %v562
    %v564 = vrot.slane %v548, %v563
    %v566 = vunpack.c.l.s4 1966171168
    %v567 = vunpack.c.0.s8 %v566
    %v568 = vlaneseq
    %v569 = vshrl.u32 %v568, 7
    %v570 = vsub.s32 %v567, %v569
    %v571 = vrot.slane %v555, %v570
    %v573 = vunpack.c.l.s4 1966171168
    %v574 = vunpack.c.0.s8 %v573
    %v575 = vlaneseq
    %v576 = vshrl.u32 %v575, 7
    %v577 = vsub.s32 %v574, %v576
    %v578 = vrot.slane %v556, %v577
    %v580 = vunpack.c.l.s4 1966171168
    %v581 = vunpack.c.0.s8 %v580
    %v582 = vlaneseq
    %v583 = vshrl.u32 %v582, 7
    %v584 = vsub.s32 %v581, %v583
    %v585 = vrot.slane %v557, %v584
    %v586 = vcombine.high %v564, %v564
    %v587 = vcombine.high %v571, %v571
    %v588 = vcombine.high %v578, %v578
    %v589 = vcombine.high %v585, %v585
    %v590 = vsel %vm509, %v564, 0
    %592 = vmatprep.subr.mxu0 0.0
    %593 = vmatpush1.msra.mxu0 %v295
    %594 = vmatprep.subr.mxu0 0.0
    %595 = vmatpush1.msra.mxu0 %v296
    %596 = vmatprep.subr.mxu0 0.0
    %597 = vmatpush1.msra.mxu0 0.0
    %598 = vmatprep.subr.mxu0 0.0
    %599 = vmatpush1.msra.mxu0 0.0
    %600 = vmatprep.subr.mxu0 0.0
    %601 = vmatpush1.msra.mxu0 0.0
    %602 = vmatprep.subr.mxu0 0.0
    %603 = vmatpush1.msra.mxu0 0.0
    %604 = vmatprep.subr.mxu0 0.0
    %605 = vmatpush1.msra.mxu0 0.0
    %606 = vmatprep.subr.mxu0 0.0
    %607 = vmatpush1.msra.mxu0 0.0
    %608 = vmatprep.subr.mxu0 0.0
    %609 = vmatpush1.msra.mxu0 0.0
    %610 = vmatprep.subr.mxu0 0.0
    %611 = vmatpush1.msra.mxu0 0.0
    %612 = vmatprep.subr.mxu0 0.0
    %613 = vmatpush1.msra.mxu0 0.0
    %614 = vmatprep.subr.mxu0 0.0
    %615 = vmatpush1.msra.mxu0 0.0
    %616 = vmatprep.subr.mxu0 0.0
    %617 = vmatpush1.msra.mxu0 0.0
    %618 = vmatprep.subr.mxu0 0.0
    %619 = vmatpush1.msra.mxu0 0.0
    %620 = vmatprep.subr.mxu0 0.0
    %621 = vmatpush1.msra.mxu0 0.0
    %622 = vmatprep.subr.mxu0 0.0
    %623 = vmatpush1.msra.mxu0 0.0
    %624 = vmatprep.subr.mxu0 0.0
    %625 = vmatpush1.msra.mxu0 0.0
    %626 = vmatprep.subr.mxu0 0.0
    %627 = vmatpush1.msra.mxu0 0.0
    %628 = vmatprep.subr.mxu0 0.0
    %629 = vmatpush1.msra.mxu0 0.0
    %630 = vmatprep.subr.mxu0 0.0
    %631 = vmatpush1.msra.mxu0 0.0
    %632 = vmatprep.subr.mxu0 0.0
    %633 = vmatpush1.msra.mxu0 0.0
    %634 = vmatprep.subr.mxu0 0.0
    %635 = vmatpush1.msra.mxu0 0.0
    %636 = vmatprep.subr.mxu0 0.0
    %637 = vmatpush1.msra.mxu0 0.0
    %638 = vmatprep.subr.mxu0 0.0
    %639 = vmatpush1.msra.mxu0 0.0
    %640 = vmatprep.subr.mxu0 0.0
    %641 = vmatpush1.msra.mxu0 0.0
    %642 = vmatprep.subr.mxu0 0.0
    %643 = vmatpush1.msra.mxu0 0.0
    %644 = vmatprep.subr.mxu0 0.0
    %645 = vmatpush1.msra.mxu0 0.0
    %646 = vmatprep.subr.mxu0 0.0
    %647 = vmatpush1.msra.mxu0 0.0
    %648 = vmatprep.subr.mxu0 0.0
    %649 = vmatpush1.msra.mxu0 0.0
    %650 = vmatprep.subr.mxu0 0.0
    %651 = vmatpush1.msra.mxu0 0.0
    %652 = vmatprep.subr.mxu0 0.0
    %653 = vmatpush1.msra.mxu0 0.0
    %654 = vmatprep.subr.mxu0 0.0
    %655 = vmatpush1.msra.mxu0 0.0
    %656 = vmatprep.mubr.f32.mxu0 0.0
    %657 = vmatmul.mubr.f32.gmra.mrb[0].mxu0 %v590
    %v658 = vpop.f32.mrb[0].mxu0
    %v659 = vadd.f32 0.0, %v658
    %v660 = vpop.f32.mrb[0].mxu0
    %661 = vdwg.mxu0
    %v662 = vsel %vm509, %v578, 0
    %664 = vmatprep.subr.mxu0 0.0
    %665 = vmatpush1.msra.mxu0 %v297
    %666 = vmatprep.subr.mxu0 0.0
    %667 = vmatpush1.msra.mxu0 %v298
    %668 = vmatprep.subr.mxu0 0.0
    %669 = vmatpush1.msra.mxu0 0.0
    %670 = vmatprep.subr.mxu0 0.0
    %671 = vmatpush1.msra.mxu0 0.0
    %672 = vmatprep.subr.mxu0 0.0
    %673 = vmatpush1.msra.mxu0 0.0
    %674 = vmatprep.subr.mxu0 0.0
    %675 = vmatpush1.msra.mxu0 0.0
    %676 = vmatprep.subr.mxu0 0.0
    %677 = vmatpush1.msra.mxu0 0.0
    %678 = vmatprep.subr.mxu0 0.0
    %679 = vmatpush1.msra.mxu0 0.0
    %680 = vmatprep.subr.mxu0 0.0
    %681 = vmatpush1.msra.mxu0 0.0
    %682 = vmatprep.subr.mxu0 0.0
    %683 = vmatpush1.msra.mxu0 0.0
    %684 = vmatprep.subr.mxu0 0.0
    %685 = vmatpush1.msra.mxu0 0.0
    %686 = vmatprep.subr.mxu0 0.0
    %687 = vmatpush1.msra.mxu0 0.0
    %688 = vmatprep.subr.mxu0 0.0
    %689 = vmatpush1.msra.mxu0 0.0
    %690 = vmatprep.subr.mxu0 0.0
    %691 = vmatpush1.msra.mxu0 0.0
    %692 = vmatprep.subr.mxu0 0.0
    %693 = vmatpush1.msra.mxu0 0.0
    %694 = vmatprep.subr.mxu0 0.0
    %695 = vmatpush1.msra.mxu0 0.0
    %696 = vmatprep.subr.mxu0 0.0
    %697 = vmatpush1.msra.mxu0 0.0
    %698 = vmatprep.subr.mxu0 0.0
    %699 = vmatpush1.msra.mxu0 0.0
    %700 = vmatprep.subr.mxu0 0.0
    %701 = vmatpush1.msra.mxu0 0.0
    %702 = vmatprep.subr.mxu0 0.0
    %703 = vmatpush1.msra.mxu0 0.0
    %704 = vmatprep.subr.mxu0 0.0
    %705 = vmatpush1.msra.mxu0 0.0
    %706 = vmatprep.subr.mxu0 0.0
    %707 = vmatpush1.msra.mxu0 0.0
    %708 = vmatprep.subr.mxu0 0.0
    %709 = vmatpush1.msra.mxu0 0.0
    %710 = vmatprep.subr.mxu0 0.0
    %711 = vmatpush1.msra.mxu0 0.0
    %712 = vmatprep.subr.mxu0 0.0
    %713 = vmatpush1.msra.mxu0 0.0
    %714 = vmatprep.subr.mxu0 0.0
    %715 = vmatpush1.msra.mxu0 0.0
    %716 = vmatprep.subr.mxu0 0.0
    %717 = vmatpush1.msra.mxu0 0.0
    %718 = vmatprep.subr.mxu0 0.0
    %719 = vmatpush1.msra.mxu0 0.0
    %720 = vmatprep.subr.mxu0 0.0
    %721 = vmatpush1.msra.mxu0 0.0
    %722 = vmatprep.subr.mxu0 0.0
    %723 = vmatpush1.msra.mxu0 0.0
    %724 = vmatprep.subr.mxu0 0.0
    %725 = vmatpush1.msra.mxu0 0.0
    %726 = vmatprep.subr.mxu0 0.0
    %727 = vmatpush1.msra.mxu0 0.0
    %728 = vmatprep.mubr.f32.mxu0 0.0
    %729 = vmatmul.mubr.f32.gmra.mrb[0].mxu0 %v662
    %v730 = vpop.f32.mrb[0].mxu0
    %v731 = vadd.f32 0.0, %v730
    %v732 = vpop.f32.mrb[0].mxu0
    %733 = vdwg.mxu0
    %v734 = vsel %vm509, %v586, 0
    %736 = vmatprep.subr.mxu0 0.0
    %737 = vmatpush1.msra.mxu0 %v299
    %738 = vmatprep.subr.mxu0 0.0
    %739 = vmatpush1.msra.mxu0 %v300
    %740 = vmatprep.subr.mxu0 0.0
    %741 = vmatpush1.msra.mxu0 0.0
    %742 = vmatprep.subr.mxu0 0.0
    %743 = vmatpush1.msra.mxu0 0.0
    %744 = vmatprep.subr.mxu0 0.0
    %745 = vmatpush1.msra.mxu0 0.0
    %746 = vmatprep.subr.mxu0 0.0
    %747 = vmatpush1.msra.mxu0 0.0
    %748 = vmatprep.subr.mxu0 0.0
    %749 = vmatpush1.msra.mxu0 0.0
    %750 = vmatprep.subr.mxu0 0.0
    %751 = vmatpush1.msra.mxu0 0.0
    %752 = vmatprep.subr.mxu0 0.0
    %753 = vmatpush1.msra.mxu0 0.0
    %754 = vmatprep.subr.mxu0 0.0
    %755 = vmatpush1.msra.mxu0 0.0
    %756 = vmatprep.subr.mxu0 0.0
    %757 = vmatpush1.msra.mxu0 0.0
    %758 = vmatprep.subr.mxu0 0.0
    %759 = vmatpush1.msra.mxu0 0.0
    %760 = vmatprep.subr.mxu0 0.0
    %761 = vmatpush1.msra.mxu0 0.0
    %762 = vmatprep.subr.mxu0 0.0
    %763 = vmatpush1.msra.mxu0 0.0
    %764 = vmatprep.subr.mxu0 0.0
    %765 = vmatpush1.msra.mxu0 0.0
    %766 = vmatprep.subr.mxu0 0.0
    %767 = vmatpush1.msra.mxu0 0.0
    %768 = vmatprep.subr.mxu0 0.0
    %769 = vmatpush1.msra.mxu0 0.0
    %770 = vmatprep.subr.mxu0 0.0
    %771 = vmatpush1.msra.mxu0 0.0
    %772 = vmatprep.subr.mxu0 0.0
    %773 = vmatpush1.msra.mxu0 0.0
    %774 = vmatprep.subr.mxu0 0.0
    %775 = vmatpush1.msra.mxu0 0.0
    %776 = vmatprep.subr.mxu0 0.0
    %777 = vmatpush1.msra.mxu0 0.0
    %778 = vmatprep.subr.mxu0 0.0
    %779 = vmatpush1.msra.mxu0 0.0
    %780 = vmatprep.subr.mxu0 0.0
    %781 = vmatpush1.msra.mxu0 0.0
    %782 = vmatprep.subr.mxu0 0.0
    %783 = vmatpush1.msra.mxu0 0.0
    %784 = vmatprep.subr.mxu0 0.0
    %785 = vmatpush1.msra.mxu0 0.0
    %786 = vmatprep.subr.mxu0 0.0
    %787 = vmatpush1.msra.mxu0 0.0
    %788 = vmatprep.subr.mxu0 0.0
    %789 = vmatpush1.msra.mxu0 0.0
    %790 = vmatprep.subr.mxu0 0.0
    %791 = vmatpush1.msra.mxu0 0.0
    %792 = vmatprep.subr.mxu0 0.0
    %793 = vmatpush1.msra.mxu0 0.0
    %794 = vmatprep.subr.mxu0 0.0
    %795 = vmatpush1.msra.mxu0 0.0
    %796 = vmatprep.subr.mxu0 0.0
    %797 = vmatpush1.msra.mxu0 0.0
    %798 = vmatprep.subr.mxu0 0.0
    %799 = vmatpush1.msra.mxu0 0.0
    %800 = vmatprep.mubr.f32.mxu0 0.0
    %801 = vmatmul.mubr.f32.gmra.mrb[0].mxu0 %v734
    %v802 = vpop.f32.mrb[0].mxu0
    %v803 = vadd.f32 0.0, %v802
    %v804 = vpop.f32.mrb[0].mxu0
    %805 = vdwg.mxu0
    %v806 = vsel %vm509, %v588, 0
    %808 = vmatprep.subr.mxu0 0.0
    %809 = vmatpush1.msra.mxu0 %v301
    %810 = vmatprep.subr.mxu0 0.0
    %811 = vmatpush1.msra.mxu0 %v302
    %812 = vmatprep.subr.mxu0 0.0
    %813 = vmatpush1.msra.mxu0 0.0
    %814 = vmatprep.subr.mxu0 0.0
    %815 = vmatpush1.msra.mxu0 0.0
    %816 = vmatprep.subr.mxu0 0.0
    %817 = vmatpush1.msra.mxu0 0.0
    %818 = vmatprep.subr.mxu0 0.0
    %819 = vmatpush1.msra.mxu0 0.0
    %820 = vmatprep.subr.mxu0 0.0
    %821 = vmatpush1.msra.mxu0 0.0
    %822 = vmatprep.subr.mxu0 0.0
    %823 = vmatpush1.msra.mxu0 0.0
    %824 = vmatprep.subr.mxu0 0.0
    %825 = vmatpush1.msra.mxu0 0.0
    %826 = vmatprep.subr.mxu0 0.0
    %827 = vmatpush1.msra.mxu0 0.0
    %828 = vmatprep.subr.mxu0 0.0
    %829 = vmatpush1.msra.mxu0 0.0
    %830 = vmatprep.subr.mxu0 0.0
    %831 = vmatpush1.msra.mxu0 0.0
    %832 = vmatprep.subr.mxu0 0.0
    %833 = vmatpush1.msra.mxu0 0.0
    %834 = vmatprep.subr.mxu0 0.0
    %835 = vmatpush1.msra.mxu0 0.0
    %836 = vmatprep.subr.mxu0 0.0
    %837 = vmatpush1.msra.mxu0 0.0
    %838 = vmatprep.subr.mxu0 0.0
    %839 = vmatpush1.msra.mxu0 0.0
    %840 = vmatprep.subr.mxu0 0.0
    %841 = vmatpush1.msra.mxu0 0.0
    %842 = vmatprep.subr.mxu0 0.0
    %843 = vmatpush1.msra.mxu0 0.0
    %844 = vmatprep.subr.mxu0 0.0
    %845 = vmatpush1.msra.mxu0 0.0
    %846 = vmatprep.subr.mxu0 0.0
    %847 = vmatpush1.msra.mxu0 0.0
    %848 = vmatprep.subr.mxu0 0.0
    %849 = vmatpush1.msra.mxu0 0.0
    %850 = vmatprep.subr.mxu0 0.0
    %851 = vmatpush1.msra.mxu0 0.0
    %852 = vmatprep.subr.mxu0 0.0
    %853 = vmatpush1.msra.mxu0 0.0
    %854 = vmatprep.subr.mxu0 0.0
    %855 = vmatpush1.msra.mxu0 0.0
    %856 = vmatprep.subr.mxu0 0.0
    %857 = vmatpush1.msra.mxu0 0.0
    %858 = vmatprep.subr.mxu0 0.0
    %859 = vmatpush1.msra.mxu0 0.0
    %860 = vmatprep.subr.mxu0 0.0
    %861 = vmatpush1.msra.mxu0 0.0
    %862 = vmatprep.subr.mxu0 0.0
    %863 = vmatpush1.msra.mxu0 0.0
    %864 = vmatprep.subr.mxu0 0.0
    %865 = vmatpush1.msra.mxu0 0.0
    %866 = vmatprep.subr.mxu0 0.0
    %867 = vmatpush1.msra.mxu0 0.0
    %868 = vmatprep.subr.mxu0 0.0
    %869 = vmatpush1.msra.mxu0 0.0
    %870 = vmatprep.subr.mxu0 0.0
    %871 = vmatpush1.msra.mxu0 0.0
    %872 = vmatprep.mubr.f32.mxu0 0.0
    %873 = vmatmul.mubr.f32.gmra.mrb[0].mxu0 %v806
    %v874 = vpop.f32.mrb[0].mxu0
    %v875 = vadd.f32 0.0, %v874
    %v876 = vpop.f32.mrb[0].mxu0
    %877 = vdwg.mxu0
    %v878 = vsel %vm509, %v571, 0
    %880 = vmatprep.subr.mxu0 0.0
    %881 = vmatpush1.msra.mxu0 %v303
    %882 = vmatprep.subr.mxu0 0.0
    %883 = vmatpush1.msra.mxu0 %v304
    %884 = vmatprep.subr.mxu0 0.0
    %885 = vmatpush1.msra.mxu0 0.0
    %886 = vmatprep.subr.mxu0 0.0
    %887 = vmatpush1.msra.mxu0 0.0
    %888 = vmatprep.subr.mxu0 0.0
    %889 = vmatpush1.msra.mxu0 0.0
    %890 = vmatprep.subr.mxu0 0.0
    %891 = vmatpush1.msra.mxu0 0.0
    %892 = vmatprep.subr.mxu0 0.0
    %893 = vmatpush1.msra.mxu0 0.0
    %894 = vmatprep.subr.mxu0 0.0
    %895 = vmatpush1.msra.mxu0 0.0
    %896 = vmatprep.subr.mxu0 0.0
    %897 = vmatpush1.msra.mxu0 0.0
    %898 = vmatprep.subr.mxu0 0.0
    %899 = vmatpush1.msra.mxu0 0.0
    %900 = vmatprep.subr.mxu0 0.0
    %901 = vmatpush1.msra.mxu0 0.0
    %902 = vmatprep.subr.mxu0 0.0
    %903 = vmatpush1.msra.mxu0 0.0
    %904 = vmatprep.subr.mxu0 0.0
    %905 = vmatpush1.msra.mxu0 0.0
    %906 = vmatprep.subr.mxu0 0.0
    %907 = vmatpush1.msra.mxu0 0.0
    %908 = vmatprep.subr.mxu0 0.0
    %909 = vmatpush1.msra.mxu0 0.0
    %910 = vmatprep.subr.mxu0 0.0
    %911 = vmatpush1.msra.mxu0 0.0
    %912 = vmatprep.subr.mxu0 0.0
    %913 = vmatpush1.msra.mxu0 0.0
    %914 = vmatprep.subr.mxu0 0.0
    %915 = vmatpush1.msra.mxu0 0.0
    %916 = vmatprep.subr.mxu0 0.0
    %917 = vmatpush1.msra.mxu0 0.0
    %918 = vmatprep.subr.mxu0 0.0
    %919 = vmatpush1.msra.mxu0 0.0
    %920 = vmatprep.subr.mxu0 0.0
    %921 = vmatpush1.msra.mxu0 0.0
    %922 = vmatprep.subr.mxu0 0.0
    %923 = vmatpush1.msra.mxu0 0.0
    %924 = vmatprep.subr.mxu0 0.0
    %925 = vmatpush1.msra.mxu0 0.0
    %926 = vmatprep.subr.mxu0 0.0
    %927 = vmatpush1.msra.mxu0 0.0
    %928 = vmatprep.subr.mxu0 0.0
    %929 = vmatpush1.msra.mxu0 0.0
    %930 = vmatprep.subr.mxu0 0.0
    %931 = vmatpush1.msra.mxu0 0.0
    %932 = vmatprep.subr.mxu0 0.0
    %933 = vmatpush1.msra.mxu0 0.0
    %934 = vmatprep.subr.mxu0 0.0
    %935 = vmatpush1.msra.mxu0 0.0
    %936 = vmatprep.subr.mxu0 0.0
    %937 = vmatpush1.msra.mxu0 0.0
    %938 = vmatprep.subr.mxu0 0.0
    %939 = vmatpush1.msra.mxu0 0.0
    %940 = vmatprep.subr.mxu0 0.0
    %941 = vmatpush1.msra.mxu0 0.0
    %942 = vmatprep.subr.mxu0 0.0
    %943 = vmatpush1.msra.mxu0 0.0
    %944 = vmatprep.mubr.f32.mxu0 0.0
    %945 = vmatmul.mubr.f32.gmra.mrb[0].mxu0 %v878
    %v946 = vpop.f32.mrb[0].mxu0
    %v947 = vadd.f32 0.0, %v946
    %v948 = vpop.f32.mrb[0].mxu0
    %949 = vdwg.mxu0
    %v950 = vsel %vm509, %v585, 0
    %952 = vmatprep.subr.mxu0 0.0
    %953 = vmatpush1.msra.mxu0 %v305
    %954 = vmatprep.subr.mxu0 0.0
    %955 = vmatpush1.msra.mxu0 %v306
    %956 = vmatprep.subr.mxu0 0.0
    %957 = vmatpush1.msra.mxu0 0.0
    %958 = vmatprep.subr.mxu0 0.0
    %959 = vmatpush1.msra.mxu0 0.0
    %960 = vmatprep.subr.mxu0 0.0
    %961 = vmatpush1.msra.mxu0 0.0
    %962 = vmatprep.subr.mxu0 0.0
    %963 = vmatpush1.msra.mxu0 0.0
    %964 = vmatprep.subr.mxu0 0.0
    %965 = vmatpush1.msra.mxu0 0.0
    %966 = vmatprep.subr.mxu0 0.0
    %967 = vmatpush1.msra.mxu0 0.0
    %968 = vmatprep.subr.mxu0 0.0
    %969 = vmatpush1.msra.mxu0 0.0
    %970 = vmatprep.subr.mxu0 0.0
    %971 = vmatpush1.msra.mxu0 0.0
    %972 = vmatprep.subr.mxu0 0.0
    %973 = vmatpush1.msra.mxu0 0.0
    %974 = vmatprep.subr.mxu0 0.0
    %975 = vmatpush1.msra.mxu0 0.0
    %976 = vmatprep.subr.mxu0 0.0
    %977 = vmatpush1.msra.mxu0 0.0
    %978 = vmatprep.subr.mxu0 0.0
    %979 = vmatpush1.msra.mxu0 0.0
    %980 = vmatprep.subr.mxu0 0.0
    %981 = vmatpush1.msra.mxu0 0.0
    %982 = vmatprep.subr.mxu0 0.0
    %983 = vmatpush1.msra.mxu0 0.0
    %984 = vmatprep.subr.mxu0 0.0
    %985 = vmatpush1.msra.mxu0 0.0
    %986 = vmatprep.subr.mxu0 0.0
    %987 = vmatpush1.msra.mxu0 0.0
    %988 = vmatprep.subr.mxu0 0.0
    %989 = vmatpush1.msra.mxu0 0.0
    %990 = vmatprep.subr.mxu0 0.0
    %991 = vmatpush1.msra.mxu0 0.0
    %992 = vmatprep.subr.mxu0 0.0
    %993 = vmatpush1.msra.mxu0 0.0
    %994 = vmatprep.subr.mxu0 0.0
    %995 = vmatpush1.msra.mxu0 0.0
    %996 = vmatprep.subr.mxu0 0.0
    %997 = vmatpush1.msra.mxu0 0.0
    %998 = vmatprep.subr.mxu0 0.0
    %999 = vmatpush1.msra.mxu0 0.0
    %1000 = vmatprep.subr.mxu0 0.0
    %1001 = vmatpush1.msra.mxu0 0.0
    %1002 = vmatprep.subr.mxu0 0.0
    %1003 = vmatpush1.msra.mxu0 0.0
    %1004 = vmatprep.subr.mxu0 0.0
    %1005 = vmatpush1.msra.mxu0 0.0
    %1006 = vmatprep.subr.mxu0 0.0
    %1007 = vmatpush1.msra.mxu0 0.0
    %1008 = vmatprep.subr.mxu0 0.0
    %1009 = vmatpush1.msra.mxu0 0.0
    %1010 = vmatprep.subr.mxu0 0.0
    %1011 = vmatpush1.msra.mxu0 0.0
    %1012 = vmatprep.subr.mxu0 0.0
    %1013 = vmatpush1.msra.mxu0 0.0
    %1014 = vmatprep.subr.mxu0 0.0
    %1015 = vmatpush1.msra.mxu0 0.0
    %1016 = vmatprep.mubr.f32.mxu0 0.0
    %1017 = vmatmul.mubr.f32.gmra.mrb[0].mxu0 %v950
    %v1018 = vpop.f32.mrb[0].mxu0
    %v1019 = vadd.f32 0.0, %v1018
    %v1020 = vpop.f32.mrb[0].mxu0
    %1021 = vdwg.mxu0
    %v1022 = vsel %vm509, %v587, 0
    %1024 = vmatprep.subr.mxu0 0.0
    %1025 = vmatpush1.msra.mxu0 %v307
    %1026 = vmatprep.subr.mxu0 0.0
    %1027 = vmatpush1.msra.mxu0 %v308
    %1028 = vmatprep.subr.mxu0 0.0
    %1029 = vmatpush1.msra.mxu0 0.0
    %1030 = vmatprep.subr.mxu0 0.0
    %1031 = vmatpush1.msra.mxu0 0.0
    %1032 = vmatprep.subr.mxu0 0.0
    %1033 = vmatpush1.msra.mxu0 0.0
    %1034 = vmatprep.subr.mxu0 0.0
    %1035 = vmatpush1.msra.mxu0 0.0
    %1036 = vmatprep.subr.mxu0 0.0
    %1037 = vmatpush1.msra.mxu0 0.0
    %1038 = vmatprep.subr.mxu0 0.0
    %1039 = vmatpush1.msra.mxu0 0.0
    %1040 = vmatprep.subr.mxu0 0.0
    %1041 = vmatpush1.msra.mxu0 0.0
    %1042 = vmatprep.subr.mxu0 0.0
    %1043 = vmatpush1.msra.mxu0 0.0
    %1044 = vmatprep.subr.mxu0 0.0
    %1045 = vmatpush1.msra.mxu0 0.0
    %1046 = vmatprep.subr.mxu0 0.0
    %1047 = vmatpush1.msra.mxu0 0.0
    %1048 = vmatprep.subr.mxu0 0.0
    %1049 = vmatpush1.msra.mxu0 0.0
    %1050 = vmatprep.subr.mxu0 0.0
    %1051 = vmatpush1.msra.mxu0 0.0
    %1052 = vmatprep.subr.mxu0 0.0
    %1053 = vmatpush1.msra.mxu0 0.0
    %1054 = vmatprep.subr.mxu0 0.0
    %1055 = vmatpush1.msra.mxu0 0.0
    %1056 = vmatprep.subr.mxu0 0.0
    %1057 = vmatpush1.msra.mxu0 0.0
    %1058 = vmatprep.subr.mxu0 0.0
    %1059 = vmatpush1.msra.mxu0 0.0
    %1060 = vmatprep.subr.mxu0 0.0
    %1061 = vmatpush1.msra.mxu0 0.0
    %1062 = vmatprep.subr.mxu0 0.0
    %1063 = vmatpush1.msra.mxu0 0.0
    %1064 = vmatprep.subr.mxu0 0.0
    %1065 = vmatpush1.msra.mxu0 0.0
    %1066 = vmatprep.subr.mxu0 0.0
    %1067 = vmatpush1.msra.mxu0 0.0
    %1068 = vmatprep.subr.mxu0 0.0
    %1069 = vmatpush1.msra.mxu0 0.0
    %1070 = vmatprep.subr.mxu0 0.0
    %1071 = vmatpush1.msra.mxu0 0.0
    %1072 = vmatprep.subr.mxu0 0.0
    %1073 = vmatpush1.msra.mxu0 0.0
    %1074 = vmatprep.subr.mxu0 0.0
    %1075 = vmatpush1.msra.mxu0 0.0
    %1076 = vmatprep.subr.mxu0 0.0
    %1077 = vmatpush1.msra.mxu0 0.0
    %1078 = vmatprep.subr.mxu0 0.0
    %1079 = vmatpush1.msra.mxu0 0.0
    %1080 = vmatprep.subr.mxu0 0.0
    %1081 = vmatpush1.msra.mxu0 0.0
    %1082 = vmatprep.subr.mxu0 0.0
    %1083 = vmatpush1.msra.mxu0 0.0
    %1084 = vmatprep.subr.mxu0 0.0
    %1085 = vmatpush1.msra.mxu0 0.0
    %1086 = vmatprep.subr.mxu0 0.0
    %1087 = vmatpush1.msra.mxu0 0.0
    %1088 = vmatprep.mubr.f32.mxu0 0.0
    %1089 = vmatmul.mubr.f32.gmra.mrb[0].mxu0 %v1022
    %v1090 = vpop.f32.mrb[0].mxu0
    %v1091 = vadd.f32 0.0, %v1090
    %v1092 = vpop.f32.mrb[0].mxu0
    %1093 = vdwg.mxu0
    %v1094 = vsel %vm509, %v589, 0
    %1096 = vmatprep.subr.mxu0 0.0
    %1097 = vmatpush1.msra.mxu0 %v309
    %1098 = vmatprep.subr.mxu0 0.0
    %1099 = vmatpush1.msra.mxu0 %v310
    %1100 = vmatprep.subr.mxu0 0.0
    %1101 = vmatpush1.msra.mxu0 0.0
    %1102 = vmatprep.subr.mxu0 0.0
    %1103 = vmatpush1.msra.mxu0 0.0
    %1104 = vmatprep.subr.mxu0 0.0
    %1105 = vmatpush1.msra.mxu0 0.0
    %1106 = vmatprep.subr.mxu0 0.0
    %1107 = vmatpush1.msra.mxu0 0.0
    %1108 = vmatprep.subr.mxu0 0.0
    %1109 = vmatpush1.msra.mxu0 0.0
    %1110 = vmatprep.subr.mxu0 0.0
    %1111 = vmatpush1.msra.mxu0 0.0
    %1112 = vmatprep.subr.mxu0 0.0
    %1113 = vmatpush1.msra.mxu0 0.0
    %1114 = vmatprep.subr.mxu0 0.0
    %1115 = vmatpush1.msra.mxu0 0.0
    %1116 = vmatprep.subr.mxu0 0.0
    %1117 = vmatpush1.msra.mxu0 0.0
    %1118 = vmatprep.subr.mxu0 0.0
    %1119 = vmatpush1.msra.mxu0 0.0
    %1120 = vmatprep.subr.mxu0 0.0
    %1121 = vmatpush1.msra.mxu0 0.0
    %1122 = vmatprep.subr.mxu0 0.0
    %1123 = vmatpush1.msra.mxu0 0.0
    %1124 = vmatprep.subr.mxu0 0.0
    %1125 = vmatpush1.msra.mxu0 0.0
    %1126 = vmatprep.subr.mxu0 0.0
    %1127 = vmatpush1.msra.mxu0 0.0
    %1128 = vmatprep.subr.mxu0 0.0
    %1129 = vmatpush1.msra.mxu0 0.0
    %1130 = vmatprep.subr.mxu0 0.0
    %1131 = vmatpush1.msra.mxu0 0.0
    %1132 = vmatprep.subr.mxu0 0.0
    %1133 = vmatpush1.msra.mxu0 0.0
    %1134 = vmatprep.subr.mxu0 0.0
    %1135 = vmatpush1.msra.mxu0 0.0
    %1136 = vmatprep.subr.mxu0 0.0
    %1137 = vmatpush1.msra.mxu0 0.0
    %1138 = vmatprep.subr.mxu0 0.0
    %1139 = vmatpush1.msra.mxu0 0.0
    %1140 = vmatprep.subr.mxu0 0.0
    %1141 = vmatpush1.msra.mxu0 0.0
    %1142 = vmatprep.subr.mxu0 0.0
    %1143 = vmatpush1.msra.mxu0 0.0
    %1144 = vmatprep.subr.mxu0 0.0
    %1145 = vmatpush1.msra.mxu0 0.0
    %1146 = vmatprep.subr.mxu0 0.0
    %1147 = vmatpush1.msra.mxu0 0.0
    %1148 = vmatprep.subr.mxu0 0.0
    %1149 = vmatpush1.msra.mxu0 0.0
    %1150 = vmatprep.subr.mxu0 0.0
    %1151 = vmatpush1.msra.mxu0 0.0
    %1152 = vmatprep.subr.mxu0 0.0
    %1153 = vmatpush1.msra.mxu0 0.0
    %1154 = vmatprep.subr.mxu0 0.0
    %1155 = vmatpush1.msra.mxu0 0.0
    %1156 = vmatprep.subr.mxu0 0.0
    %1157 = vmatpush1.msra.mxu0 0.0
    %1158 = vmatprep.subr.mxu0 0.0
    %1159 = vmatpush1.msra.mxu0 0.0
    %1160 = vmatprep.mubr.f32.mxu0 0.0
    %1161 = vmatmul.mubr.f32.gmra.mrb[0].mxu0 %v1094
    %v1162 = vpop.f32.mrb[0].mxu0
    %v1163 = vadd.f32 0.0, %v1162
    %v1164 = vpop.f32.mrb[0].mxu0
    %1165 = vdwg.mxu0
    %v1174 = vrot.slane %v731, 7
    %v1175 = vsel %vm492, %v1174, %v659
    %v1176 = vrot.slane %v803, 6
    %v1177 = vsel %vm494, %v1176, %v1175
    %v1178 = vrot.slane %v875, 5
    %v1179 = vsel %vm496, %v1178, %v1177
    %v1180 = vrot.slane %v947, 4
    %v1181 = vsel %vm498, %v1180, %v1179
    %v1182 = vrot.slane %v1019, 3
    %v1183 = vsel %vm500, %v1182, %v1181
    %v1184 = vrot.slane %v1091, 2
    %v1185 = vsel %vm502, %v1184, %v1183
    %v1186 = vrot.slane %v1163, 1
    %v1187 = vsel %vm504, %v1186, %v1185
    %v1189 = vadd.f32 %v539, %v1187
    %1190 = vst [vmem:[#allocation4] sm:$0xff] %v1189
    %1191 = vst.msk [vmem:[#allocation2] sm:$0xff] %vm531, %v513
    // Predicated region
    $region38: #{tpu_custom_call.1} parent=1 // pred_check
      %p1192 = pneg %p55
    $region39: #{tpu_custom_call.1} parent=1 // pred_check_branch
      %1194 = sbr.rel (%p1192) target = $region41
    $region40: #{tpu_custom_call.1} parent=1 // pred_region
      %v1195 = vld [vmem:[#allocation3] sm:$0xff]
      %v1196 = vmax.f32 %v1195, 1e-30
      %v1197 = vrcp.pop %v1196
      %v1198 = vld [vmem:[#allocation4] sm:$0xff]
      %1200 = vset.pattern.permute.xlu0 0
      %1201 = vperm.xlu0 %1200, %v1197
      %v1202 = vpop.permute.xlu0 %1201
      %v1204 = vmul.f32 %v1198, %v1202
      %1205 = vst [vmem:[#allocation11] sm:$0xff] %v1204
    $region41: #{tpu_custom_call.1} parent=1 // pred_fallthru
      _
    // Predicated region
    $region42: #{tpu_custom_call.1} parent=1 // pred_check
      _
    $region43: #{tpu_custom_call.1} parent=1 // pred_check_branch
      %1207 = sbr.rel (0) target = $region45
    $region44: #{tpu_custom_call.1} parent=1 // pred_region
      %s1209 = ssub.s32 128, 128
      %1210 = vsyncadd [#allocation8], %s1209
      %s1212 = sshll.u32 [#allocation11], 4
      %s1213 = int_to_ptr.vmem [resolvable:$true] %s1212
      %1215 = dma.vmem_to_hbm [thread:$0]  %s1213, 128, %s6, [#allocation8]
    $region45: #{tpu_custom_call.1} parent=1 // pred_fallthru
      _
    // Predicated region
    $region46: #{tpu_custom_call.1} parent=1 // pred_check
      _
    $region47: #{tpu_custom_call.1} parent=1 // pred_check_branch
      %1217 = sbr.rel (0) target = $region49
    $region48: #{tpu_custom_call.1} parent=1 // pred_region
      %1218 = dma.done [#allocation8], 128
    $region49: #{tpu_custom_call.1} parent=1 // pred_fallthru
      _
    %1219 = vsyncpa [#allocation7], 1
    %1220 = vsyncpa [#allocation10], 1
    %1221 = vsyncpa [#allocation8], 1

</llo_original>
